<compile_context>
chip_gen: v6e
topology: v6e:2x2x1
jax: 0.10.0
libtpu: 0.0.40
codegen_flags: <defaults>
</compile_context>

<pallas_src>
import jax
import jax.numpy as jnp
from jax.experimental import pallas as pl
from jax.experimental.pallas import tpu as pltpu


# ---------------------------------------------------------------------------
# Encoder kernel: x @ W1 (K-tiled over vocab) -> softplus -> @ W2 -> softplus
#                 -> @ Wt (BN folded) -> exp  ==> Dirichlet concentration
# ---------------------------------------------------------------------------
def _encoder_kernel(x_ref, w1_ref, b1_ref, w2_ref, b2_ref,
                    wt_ref, bt_ref, alpha_ref, acc_ref):
    k = pl.program_id(1)

    @pl.when(k == 0)
    def _init():
        acc_ref[...] = jnp.zeros_like(acc_ref)

    # Partial x @ W1 over this vocab tile: bf16 MXU operands, f32 accumulate.
    acc_ref[...] += jnp.dot(x_ref[...], w1_ref[...],
                            preferred_element_type=jnp.float32)

    @pl.when(k == pl.num_programs(1) - 1)
    def _finish():
        h = jax.nn.softplus(acc_ref[...] + b1_ref[...])
        h = jax.nn.softplus(
            jnp.dot(h.astype(jnp.bfloat16), w2_ref[...],
                    preferred_element_type=jnp.float32) + b2_ref[...])
        # TODO(synk): nn.Dropout(0.2) on h is eval-mode identity (no RNG mask).
        z = jnp.dot(h.astype(jnp.bfloat16), wt_ref[...],
                    preferred_element_type=jnp.float32) + bt_ref[...]
        # BatchNorm1d (eval) already folded into wt/bt at init time.
        alpha_ref[...] = jnp.exp(z)


# ---------------------------------------------------------------------------
# Parameter init (deterministic, nn.Linear-style uniform); BN folded into h2t
# ---------------------------------------------------------------------------
def _linear_init(key, fan_in, fan_out):
    kw, kb = jax.random.split(key)
    bound = 1.0 / jnp.sqrt(fan_in)
    w = jax.random.uniform(kw, (fan_in, fan_out), jnp.float32, -bound, bound)
    b = jax.random.uniform(kb, (1, fan_out), jnp.float32, -bound, bound)
    return w, b


def init_prodlda_params(key, vocab_size, num_topics, hidden_size):
    k1, k2, k3, _k4 = jax.random.split(key, 4)
    w1, b1 = _linear_init(k1, vocab_size, hidden_size)    # mlp[0]
    w2, b2 = _linear_init(k2, hidden_size, hidden_size)   # mlp[2]
    wt, bt = _linear_init(k3, hidden_size, num_topics)    # h2t[0]
    # BatchNorm1d(num_topics), eval mode: running_mean=0, running_var=1,
    # weight=1, bias=0, eps=1e-5  ->  per-feature affine z*scale + shift,
    # folded directly into the h2t linear.
    eps = 1e-5
    bn_scale = 1.0 / jnp.sqrt(1.0 + eps)
    bn_shift = 0.0
    wt = wt * bn_scale
    bt = bt * bn_scale + bn_shift
    return dict(w1=w1, b1=b1, w2=w2, b2=b2, wt=wt, bt=bt)


# ---------------------------------------------------------------------------
# Wrapper
# ---------------------------------------------------------------------------
def _round_up(x, m):
    return (x + m - 1) // m * m


def _pick_vocab_tile(v):
    # Largest lane-aligned vocab tile that divides V (keeps the K-reduction
    # blocks double-bufferable and under VMEM budget at large V; falls back
    # to the full dim if V is not 128-aligned, which is always legal).
    for tv in (8192, 4096, 2048, 1024, 512, 256, 128):
        if v % tv == 0:
            return tv
    return v


def prodlda_forward(params, input_bows, rng_key):
    B, V = input_bows.shape
    H = params["w1"].shape[1]
    T = params["wt"].shape[1]

    # --- batch / vocab tiling -----------------------------------------------
    tile_b = min(256, _round_up(B, 8))
    b_pad = _round_up(B, tile_b)
    tile_v = _pick_vocab_tile(V)

    x = input_bows
    if b_pad != B:
        x = jnp.pad(x, ((0, b_pad - B), (0, 0)))

    # bf16 MXU operands (f32 accumulation inside the kernel); BOW counts are
    # small integers so the bf16 cast of x is exact for typical corpora.
    x_bf = x.astype(jnp.bfloat16)
    w1 = params["w1"].astype(jnp.bfloat16)
    w2 = params["w2"].astype(jnp.bfloat16)
    wt = params["wt"].astype(jnp.bfloat16)

    grid = (b_pad // tile_b, V // tile_v)

    alpha = pl.pallas_call(
        _encoder_kernel,
        out_shape=jax.ShapeDtypeStruct((b_pad, T), jnp.float32),
        grid_spec=pltpu.PrefetchScalarGridSpec(
            num_scalar_prefetch=0,
            grid=grid,
            in_specs=[
                pl.BlockSpec((tile_b, tile_v), lambda i, k: (i, k)),   # x
                pl.BlockSpec((tile_v, H), lambda i, k: (k, 0)),        # W1
                pl.BlockSpec((1, H), lambda i, k: (0, 0)),             # b1
                pl.BlockSpec((H, H), lambda i, k: (0, 0)),             # W2
                pl.BlockSpec((1, H), lambda i, k: (0, 0)),             # b2
                pl.BlockSpec((H, T), lambda i, k: (0, 0)),             # Wt (BN folded)
                pl.BlockSpec((1, T), lambda i, k: (0, 0)),             # bt (BN folded)
            ],
            out_specs=pl.BlockSpec((tile_b, T), lambda i, k: (i, 0)),  # alpha
            scratch_shapes=[pltpu.VMEM((tile_b, H), jnp.float32)],     # x@W1 acc
        ),
        compiler_params=pltpu.CompilerParams(
            dimension_semantics=("parallel", "arbitrary"),
            vmem_limit_bytes=64 * 1024 * 1024,
        ),
    )(x_bf, w1, params["b1"], w2, params["b2"], wt, params["bt"])

    alpha = alpha[:B]

    # --- Dirichlet rsample: Gamma draws + normalization (plain JAX) --------
    # TODO(synk): torch.distributions.Dirichlet.rsample RNG has no Pallas
    # equivalent; Gamma(alpha, 1) is drawn with jax.random.gamma.  The
    # normalization is a trivial VPU/XLU op, so it stays in jnp (no extra
    # kernel launch / HBM round trip).  Denominator clamped against underflow.
    gamma = jax.random.gamma(rng_key, alpha).astype(jnp.float32)
    denom = jnp.maximum(jnp.sum(gamma, axis=-1, keepdims=True),
                        jnp.finfo(jnp.float32).tiny)
    sample = gamma / denom

    # TODO(synk): nn.Dropout(0.2) on the sample is eval-mode identity here.
    # NOTE: the PyTorch forward also computes softmax(dec_projection(sample))
    # and rec_loss, but discards them and returns only `sample`; that dead
    # decoder work is intentionally omitted (perf review item #1).
    return sample


if __name__ == "__main__":
    # Small shapes consistent with the module's forward
    B, VOCAB, HIDDEN, TOPICS = 8, 256, 64, 128

    key = jax.random.PRNGKey(0)
    k_param, k_data, k_sample = jax.random.split(key, 3)

    params = init_prodlda_params(k_param, VOCAB, TOPICS, HIDDEN)
    # bag-of-words counts
    input_bows = jax.random.poisson(k_data, 1.0, (B, VOCAB)).astype(jnp.float32)

    sample = prodlda_forward(params, input_bows, k_sample)
    sample = jax.block_until_ready(sample)

    assert sample.shape == (B, TOPICS)
    assert bool(jnp.all(jnp.isfinite(sample)))
    # Dirichlet samples live on the simplex
    assert bool(jnp.allclose(jnp.sum(sample, axis=-1), 1.0, atol=1e-4))

    print("KERNEL_OK")
</pallas_src>

<mosaic_0001>
module attributes {stable_mosaic.version = 11 : i64} {
  func.func @_encoder_kernel(%arg0: i32, %arg1: i32, %arg2: memref<8x256xbf16, #tpu.memory_space<vmem>>, %arg3: memref<256x64xbf16, #tpu.memory_space<vmem>>, %arg4: memref<1x64xf32, #tpu.memory_space<vmem>>, %arg5: memref<64x64xbf16, #tpu.memory_space<vmem>>, %arg6: memref<1x64xf32, #tpu.memory_space<vmem>>, %arg7: memref<64x128xbf16, #tpu.memory_space<vmem>>, %arg8: memref<1x128xf32, #tpu.memory_space<vmem>>, %arg9: memref<8x128xf32, #tpu.memory_space<vmem>>, %arg10: memref<8x64xf32, #tpu.memory_space<vmem>>) attributes {dimension_semantics = [#tpu.dimension_semantics<parallel>, #tpu.dimension_semantics<arbitrary>], iteration_bounds = array<i64: 1, 1>, scalar_prefetch = 0 : i64, scratch_operands = 1 : i64, tpu.core_type = #tpu.core_type<tc>, window_params = [{transform_indices = @transform_0, window_bounds = array<i64: 8, 256>}, {transform_indices = @transform_1, window_bounds = array<i64: 256, 64>}, {pipeline_mode = #tpu.pipeline_mode<synchronous>, transform_indices = @transform_2, window_bounds = array<i64: 1, 64>}, {pipeline_mode = #tpu.pipeline_mode<synchronous>, transform_indices = @transform_3, window_bounds = array<i64: 64, 64>}, {pipeline_mode = #tpu.pipeline_mode<synchronous>, transform_indices = @transform_4, window_bounds = array<i64: 1, 64>}, {pipeline_mode = #tpu.pipeline_mode<synchronous>, transform_indices = @transform_5, window_bounds = array<i64: 64, 128>}, {pipeline_mode = #tpu.pipeline_mode<synchronous>, transform_indices = @transform_6, window_bounds = array<i64: 1, 128>}, {transform_indices = @transform_7, window_bounds = array<i64: 8, 128>}]} {
    %c0_i32 = arith.constant 0 : i32
    %0 = arith.cmpi eq, %arg1, %c0_i32 : i32
    %1 = arith.extui %0 : i1 to i32
    %c0_i32_0 = arith.constant 0 : i32
    %2 = arith.cmpi ne, %1, %c0_i32_0 : i32
    scf.if %2 {
      %cst_10 = arith.constant 0.000000e+00 : f32
      %12 = vector.broadcast %cst_10 : f32 to vector<8x64xf32>
      %c0_11 = arith.constant 0 : index
      %c0_12 = arith.constant 0 : index
      %13 = vector.load %arg10[%c0_11, %c0_12] : memref<8x64xf32, #tpu.memory_space<vmem>>, vector<8x64xf32>
      tpu.vector_store %arg10[%c0_11, %c0_12], %12 {strides = array<i32>} : memref<8x64xf32, #tpu.memory_space<vmem>>, vector<8x64xf32>,
    } else {
    }
    %c0 = arith.constant 0 : index
    %c0_1 = arith.constant 0 : index
    %3 = vector.load %arg10[%c0, %c0_1] : memref<8x64xf32, #tpu.memory_space<vmem>>, vector<8x64xf32>
    %c0_2 = arith.constant 0 : index
    %c0_3 = arith.constant 0 : index
    %4 = vector.load %arg2[%c0_2, %c0_3] : memref<8x256xbf16, #tpu.memory_space<vmem>>, vector<8x256xbf16>
    %c0_4 = arith.constant 0 : index
    %c0_5 = arith.constant 0 : index
    %5 = vector.load %arg3[%c0_4, %c0_5] : memref<256x64xbf16, #tpu.memory_space<vmem>>, vector<256x64xbf16>
    %cst = arith.constant dense<0.000000e+00> : vector<8x64xf32>
    %6 = tpu.matmul %4, %5, %cst {dimension_numbers = #tpu.dot_dimension_numbers<[1], [0], [0], [1], [0, 0, 1, 1], [], []>} : vector<8x256xbf16>, vector<256x64xbf16>, vector<8x64xf32> -> vector<8x64xf32>
    %7 = arith.addf %3, %6 : vector<8x64xf32>
    %c0_6 = arith.constant 0 : index
    %c0_7 = arith.constant 0 : index
    %8 = vector.load %arg10[%c0_6, %c0_7] : memref<8x64xf32, #tpu.memory_space<vmem>>, vector<8x64xf32>
    tpu.vector_store %arg10[%c0_6, %c0_7], %7 {strides = array<i32>} : memref<8x64xf32, #tpu.memory_space<vmem>>, vector<8x64xf32>,
    %c0_i32_8 = arith.constant 0 : i32
    %9 = arith.cmpi eq, %arg1, %c0_i32_8 : i32
    %10 = arith.extui %9 : i1 to i32
    %c0_i32_9 = arith.constant 0 : i32
    %11 = arith.cmpi ne, %10, %c0_i32_9 : i32
    scf.if %11 {
      %c0_10 = arith.constant 0 : index
      %c0_11 = arith.constant 0 : index
      %12 = vector.load %arg10[%c0_10, %c0_11] : memref<8x64xf32, #tpu.memory_space<vmem>>, vector<8x64xf32>
      %c0_12 = arith.constant 0 : index
      %c0_13 = arith.constant 0 : index
      %13 = vector.load %arg4[%c0_12, %c0_13] : memref<1x64xf32, #tpu.memory_space<vmem>>, vector<1x64xf32>
      %14 = vector.broadcast %13 : vector<1x64xf32> to vector<8x64xf32>
      %15 = arith.addf %12, %14 : vector<8x64xf32>
      %cst_14 = arith.constant 0.000000e+00 : f32
      %16 = vector.broadcast %cst_14 : f32 to vector<8x64xf32>
      %17 = arith.maximumf %15, %16 : vector<8x64xf32>
      %18 = vector.broadcast %cst_14 : f32 to vector<8x64xf32>
      %19 = arith.subf %15, %18 : vector<8x64xf32>
      %20 = arith.cmpf one, %19, %19 : vector<8x64xf32>
      %21 = vector.broadcast %cst_14 : f32 to vector<8x64xf32>
      %22 = arith.addf %15, %21 : vector<8x64xf32>
      %23 = math.absf %19 : vector<8x64xf32>
      %cst_15 = arith.constant 0.000000e+00 : f32
      %24 = vector.broadcast %cst_15 : f32 to vector<8x64xf32>
      %25 = arith.subf %24, %23 : vector<8x64xf32>
      %26 = math.exp %25 : vector<8x64xf32>
      %27 = math.log1p %26 : vector<8x64xf32>
      %28 = arith.addf %17, %27 : vector<8x64xf32>
      %29 = arith.select %20, %22, %28 : vector<8x64xi1>, vector<8x64xf32>
      %30 = arith.truncf %29 : vector<8x64xf32> to vector<8x64xbf16>
      %c0_16 = arith.constant 0 : index
      %c0_17 = arith.constant 0 : index
      %31 = vector.load %arg5[%c0_16, %c0_17] : memref<64x64xbf16, #tpu.memory_space<vmem>>, vector<64x64xbf16>
      %cst_18 = arith.constant dense<0.000000e+00> : vector<8x64xf32>
      %32 = tpu.matmul %30, %31, %cst_18 {dimension_numbers = #tpu.dot_dimension_numbers<[1], [0], [0], [1], [0, 0, 1, 1], [], []>} : vector<8x64xbf16>, vector<64x64xbf16>, vector<8x64xf32> -> vector<8x64xf32>
      %c0_19 = arith.constant 0 : index
      %c0_20 = arith.constant 0 : index
      %33 = vector.load %arg6[%c0_19, %c0_20] : memref<1x64xf32, #tpu.memory_space<vmem>>, vector<1x64xf32>
      %34 = vector.broadcast %33 : vector<1x64xf32> to vector<8x64xf32>
      %35 = arith.addf %32, %34 : vector<8x64xf32>
      %cst_21 = arith.constant 0.000000e+00 : f32
      %36 = vector.broadcast %cst_21 : f32 to vector<8x64xf32>
      %37 = arith.maximumf %35, %36 : vector<8x64xf32>
      %38 = vector.broadcast %cst_21 : f32 to vector<8x64xf32>
      %39 = arith.subf %35, %38 : vector<8x64xf32>
      %40 = arith.cmpf one, %39, %39 : vector<8x64xf32>
      %41 = vector.broadcast %cst_21 : f32 to vector<8x64xf32>
      %42 = arith.addf %35, %41 : vector<8x64xf32>
      %43 = math.absf %39 : vector<8x64xf32>
      %cst_22 = arith.constant 0.000000e+00 : f32
      %44 = vector.broadcast %cst_22 : f32 to vector<8x64xf32>
      %45 = arith.subf %44, %43 : vector<8x64xf32>
      %46 = math.exp %45 : vector<8x64xf32>
      %47 = math.log1p %46 : vector<8x64xf32>
      %48 = arith.addf %37, %47 : vector<8x64xf32>
      %49 = arith.select %40, %42, %48 : vector<8x64xi1>, vector<8x64xf32>
      %50 = arith.truncf %49 : vector<8x64xf32> to vector<8x64xbf16>
      %c0_23 = arith.constant 0 : index
      %c0_24 = arith.constant 0 : index
      %51 = vector.load %arg7[%c0_23, %c0_24] : memref<64x128xbf16, #tpu.memory_space<vmem>>, vector<64x128xbf16>
      %cst_25 = arith.constant dense<0.000000e+00> : vector<8x128xf32>
      %52 = tpu.matmul %50, %51, %cst_25 {dimension_numbers = #tpu.dot_dimension_numbers<[1], [0], [0], [1], [0, 0, 1, 1], [], []>} : vector<8x64xbf16>, vector<64x128xbf16>, vector<8x128xf32> -> vector<8x128xf32>
      %c0_26 = arith.constant 0 : index
      %c0_27 = arith.constant 0 : index
      %53 = vector.load %arg8[%c0_26, %c0_27] : memref<1x128xf32, #tpu.memory_space<vmem>>, vector<1x128xf32>
      %54 = vector.broadcast %53 : vector<1x128xf32> to vector<8x128xf32>
      %55 = arith.addf %52, %54 : vector<8x128xf32>
      %56 = math.exp %55 : vector<8x128xf32>
      %c0_28 = arith.constant 0 : index
      %c0_29 = arith.constant 0 : index
      %57 = vector.load %arg9[%c0_28, %c0_29] : memref<8x128xf32, #tpu.memory_space<vmem>>, vector<8x128xf32>
      tpu.vector_store %arg9[%c0_28, %c0_29], %56 {strides = array<i32>} : memref<8x128xf32, #tpu.memory_space<vmem>>, vector<8x128xf32>,
    } else {
    }
    return
  }
  func.func @transform_0(%arg0: i32, %arg1: i32) -> (i32, i32) {
    %c0_i32 = arith.constant 0 : i32
    return %arg0, %arg1 : i32, i32
  }
  func.func @transform_1(%arg0: i32, %arg1: i32) -> (i32, i32) {
    %c0_i32 = arith.constant 0 : i32
    %c0_i32_0 = arith.constant 0 : i32
    return %arg1, %c0_i32 : i32, i32
  }
  func.func @transform_2(%arg0: i32, %arg1: i32) -> (i32, i32) {
    %c0_i32 = arith.constant 0 : i32
    %c0_i32_0 = arith.constant 0 : i32
    %c0_i32_1 = arith.constant 0 : i32
    return %c0_i32, %c0_i32_0 : i32, i32
  }
  func.func @transform_3(%arg0: i32, %arg1: i32) -> (i32, i32) {
    %c0_i32 = arith.constant 0 : i32
    %c0_i32_0 = arith.constant 0 : i32
    %c0_i32_1 = arith.constant 0 : i32
    return %c0_i32, %c0_i32_0 : i32, i32
  }
  func.func @transform_4(%arg0: i32, %arg1: i32) -> (i32, i32) {
    %c0_i32 = arith.constant 0 : i32
    %c0_i32_0 = arith.constant 0 : i32
    %c0_i32_1 = arith.constant 0 : i32
    return %c0_i32, %c0_i32_0 : i32, i32
  }
  func.func @transform_5(%arg0: i32, %arg1: i32) -> (i32, i32) {
    %c0_i32 = arith.constant 0 : i32
    %c0_i32_0 = arith.constant 0 : i32
    %c0_i32_1 = arith.constant 0 : i32
    return %c0_i32, %c0_i32_0 : i32, i32
  }
  func.func @transform_6(%arg0: i32, %arg1: i32) -> (i32, i32) {
    %c0_i32 = arith.constant 0 : i32
    %c0_i32_0 = arith.constant 0 : i32
    %c0_i32_1 = arith.constant 0 : i32
    return %c0_i32, %c0_i32_0 : i32, i32
  }
  func.func @transform_7(%arg0: i32, %arg1: i32) -> (i32, i32) {
    %c0_i32 = arith.constant 0 : i32
    %c0_i32_0 = arith.constant 0 : i32
    return %arg0, %c0_i32 : i32, i32
  }
}

</mosaic_0001>

<llo_original>
// kernel: tpu_custom_call.1
$region0: #{tpu_custom_call.1}
  #allocation0 [shape = 'u32[]', space=smem, size = 0x4, offset = 0x4, fixed_abs, tag = 'smem constant byte address 0x4 - core index']
  #allocation1 [shape = 'u32[144,128]{1,0:T(1,128)}', space=vmem, size = 0x12000, scoped, tag = 'internal scratch']
  #allocation2 [shape = 'f32[8,64]{1,0:T(8,128)}', space=vmem, size = 0x1000, scoped, tag = 'scratch operand']
  %s0 = inlined_call_operand.vmem [shape: bf16[8,256], index: 0, kind: input, shape index: {}]
  %s1 = inlined_call_operand.vmem [shape: bf16[256,64], index: 1, kind: input, shape index: {}]
  %s2 = inlined_call_operand.vmem [shape: f32[1,64], index: 2, kind: input, shape index: {}]
  %s3 = inlined_call_operand.vmem [shape: bf16[64,64], index: 3, kind: input, shape index: {}]
  %s4 = inlined_call_operand.vmem [shape: f32[1,64], index: 4, kind: input, shape index: {}]
  %s5 = inlined_call_operand.vmem [shape: bf16[64,128], index: 5, kind: input, shape index: {}]
  %s6 = inlined_call_operand.vmem [shape: f32[1,128], index: 6, kind: input, shape index: {}]
  %s7 = inlined_call_operand.hbm [shape: f32[8,128], index: 7, kind: output, shape index: {}]
  %s8 = sld [smem:[#allocation0]]
  $region46: #{tpu_custom_call.1} parent=0
    _
  %s10 = ssub.s32 1, %s8
  %s11 = scalar_select 0, %s10, %s8
  $region1: #{tpu_custom_call.1} parent=0
    #allocation3 [shape = 'u8[4096]{0}', space=vmem, size = 0x1000, scoped, tag = 'output window, operand 0, single buffered']
    #allocation4 [shape = 's32[1]{0}', space=sflag, size = 0x4, scoped, tag = 'scoped memory for tpu_custom_call.1']
    %12 = vsyncpa [#allocation4], 0
    // Predicated region
    $region2: #{tpu_custom_call.1} parent=1 // pred_check
      _
    $region3: #{tpu_custom_call.1} parent=1 // pred_check_branch
      %14 = sbr.rel (0) target = $region5
    $region4: #{tpu_custom_call.1} parent=1 // pred_region
      _
    $region5: #{tpu_custom_call.1} parent=1 // pred_fallthru
      _
    // Predicated region
    $region6: #{tpu_custom_call.1} parent=1 // pred_check
      _
    $region7: #{tpu_custom_call.1} parent=1 // pred_check_branch
      %16 = sbr.rel (0) target = $region9
    $region8: #{tpu_custom_call.1} parent=1 // pred_region
      _
    $region9: #{tpu_custom_call.1} parent=1 // pred_fallthru
      _
    // Predicated region
    $region10: #{tpu_custom_call.1} parent=1 // pred_check
      _
    $region11: #{tpu_custom_call.1} parent=1 // pred_check_branch
      %18 = sbr.rel (0) target = $region13
    $region12: #{tpu_custom_call.1} parent=1 // pred_region
      _
    $region13: #{tpu_custom_call.1} parent=1 // pred_fallthru
      _
    // Predicated region
    $region14: #{tpu_custom_call.1} parent=1 // pred_check
      _
    $region15: #{tpu_custom_call.1} parent=1 // pred_check_branch
      %20 = sbr.rel (0) target = $region17
    $region16: #{tpu_custom_call.1} parent=1 // pred_region
      _
    $region17: #{tpu_custom_call.1} parent=1 // pred_fallthru
      _
    // Predicated region
    $region18: #{tpu_custom_call.1} parent=1 // pred_check
      _
    $region19: #{tpu_custom_call.1} parent=1 // pred_check_branch
      %22 = sbr.rel (0) target = $region21
    $region20: #{tpu_custom_call.1} parent=1 // pred_region
      _
    $region21: #{tpu_custom_call.1} parent=1 // pred_fallthru
      _
    // Predicated region
    $region22: #{tpu_custom_call.1} parent=1 // pred_check
      _
    $region23: #{tpu_custom_call.1} parent=1 // pred_check_branch
      %24 = sbr.rel (0) target = $region25
    $region24: #{tpu_custom_call.1} parent=1 // pred_region
      _
    $region25: #{tpu_custom_call.1} parent=1 // pred_fallthru
      _
    // Predicated region
    $region26: #{tpu_custom_call.1} parent=1 // pred_check
      _
    $region27: #{tpu_custom_call.1} parent=1 // pred_check_branch
      %26 = sbr.rel (0) target = $region29
    $region28: #{tpu_custom_call.1} parent=1 // pred_region
      _
    $region29: #{tpu_custom_call.1} parent=1 // pred_fallthru
      _
    %p28 = scmp.eq.s32.totalorder 0, 0
    // Predicated region
    $region30: #{tpu_custom_call.1} parent=1 // pred_check
      %p29 = pneg %p28
    $region31: #{tpu_custom_call.1} parent=1 // pred_check_branch
      %31 = sbr.rel (%p29) target = $region33
    $region32: #{tpu_custom_call.1} parent=1 // pred_region
      %vm32 = vcmask 523264
      %33 = vst.msk [vmem:[#allocation2] sm:$0xff] %vm32, 0.0
    $region33: #{tpu_custom_call.1} parent=1 // pred_fallthru
      _
    %v34 = vld [vmem:[#allocation2] sm:$0xff]
    %v35 = vld [vmem:[%s0] sm:$0xff]
    %v36 = vld [vmem:[%s1] sm:$0xf]
    %v37 = vld [vmem:[%s1 + $0x4] sm:$0xf]
    %v38 = vld [vmem:[%s1 + $0x8] sm:$0xf]
    %v39 = vld [vmem:[%s1 + $0xc] sm:$0xf]
    %v40 = vld [vmem:[%s1 + $0x10] sm:$0xf]
    %v41 = vld [vmem:[%s1 + $0x14] sm:$0xf]
    %v42 = vld [vmem:[%s1 + $0x18] sm:$0xf]
    %v43 = vld [vmem:[%s1 + $0x1c] sm:$0xf]
    %v44 = vld [vmem:[%s1 + $0x20] sm:$0xf]
    %v45 = vld [vmem:[%s1 + $0x24] sm:$0xf]
    %v46 = vld [vmem:[%s1 + $0x28] sm:$0xf]
    %v47 = vld [vmem:[%s1 + $0x2c] sm:$0xf]
    %v48 = vld [vmem:[%s1 + $0x30] sm:$0xf]
    %v49 = vld [vmem:[%s1 + $0x34] sm:$0xf]
    %v50 = vld [vmem:[%s1 + $0x38] sm:$0xf]
    %v51 = vld [vmem:[%s1 + $0x3c] sm:$0xf]
    %v52 = vld [vmem:[%s1 + $0x40] sm:$0xf]
    %v53 = vld [vmem:[%s1 + $0x44] sm:$0xf]
    %v54 = vld [vmem:[%s1 + $0x48] sm:$0xf]
    %v55 = vld [vmem:[%s1 + $0x4c] sm:$0xf]
    %v56 = vld [vmem:[%s1 + $0x50] sm:$0xf]
    %v57 = vld [vmem:[%s1 + $0x54] sm:$0xf]
    %v58 = vld [vmem:[%s1 + $0x58] sm:$0xf]
    %v59 = vld [vmem:[%s1 + $0x5c] sm:$0xf]
    %v60 = vld [vmem:[%s1 + $0x60] sm:$0xf]
    %v61 = vld [vmem:[%s1 + $0x64] sm:$0xf]
    %v62 = vld [vmem:[%s1 + $0x68] sm:$0xf]
    %v63 = vld [vmem:[%s1 + $0x6c] sm:$0xf]
    %v64 = vld [vmem:[%s1 + $0x70] sm:$0xf]
    %v65 = vld [vmem:[%s1 + $0x74] sm:$0xf]
    %v66 = vld [vmem:[%s1 + $0x78] sm:$0xf]
    %v67 = vld [vmem:[%s1 + $0x7c] sm:$0xf]
    %v69 = vunpack.c.l.b16 %v35
    %v70 = vunpack.c.h.b16 %v35
    %v71 = vpack.c.b16 %v69, %v69
    %v72 = vpack.c.b16 %v70, %v70
    %v107 = vunpack.c.l.b16 %v36
    %v108 = vunpack.c.l.b16 %v37
    %v109 = vunpack.c.l.b16 %v38
    %v110 = vunpack.c.l.b16 %v39
    %v111 = vunpack.c.l.b16 %v40
    %v112 = vunpack.c.l.b16 %v41
    %v113 = vunpack.c.l.b16 %v42
    %v114 = vunpack.c.l.b16 %v43
    %v115 = vunpack.c.l.b16 %v44
    %v116 = vunpack.c.l.b16 %v45
    %v117 = vunpack.c.l.b16 %v46
    %v118 = vunpack.c.l.b16 %v47
    %v119 = vunpack.c.l.b16 %v48
    %v120 = vunpack.c.l.b16 %v49
    %v121 = vunpack.c.l.b16 %v50
    %v122 = vunpack.c.l.b16 %v51
    %v123 = vunpack.c.l.b16 %v52
    %v124 = vunpack.c.l.b16 %v53
    %v125 = vunpack.c.l.b16 %v54
    %v126 = vunpack.c.l.b16 %v55
    %v127 = vunpack.c.l.b16 %v56
    %v128 = vunpack.c.l.b16 %v57
    %v129 = vunpack.c.l.b16 %v58
    %v130 = vunpack.c.l.b16 %v59
    %v131 = vunpack.c.l.b16 %v60
    %v132 = vunpack.c.l.b16 %v61
    %v133 = vunpack.c.l.b16 %v62
    %v134 = vunpack.c.l.b16 %v63
    %v135 = vunpack.c.l.b16 %v64
    %v136 = vunpack.c.l.b16 %v65
    %v137 = vunpack.c.l.b16 %v66
    %v138 = vunpack.c.l.b16 %v67
    %v139 = vpack.c.b16 %v108, %v107
    %v140 = vpack.c.b16 %v110, %v109
    %v141 = vpack.c.b16 %v112, %v111
    %v142 = vpack.c.b16 %v114, %v113
    %v143 = vpack.c.b16 %v116, %v115
    %v144 = vpack.c.b16 %v118, %v117
    %v145 = vpack.c.b16 %v120, %v119
    %v146 = vpack.c.b16 %v122, %v121
    %v147 = vpack.c.b16 %v124, %v123
    %v148 = vpack.c.b16 %v126, %v125
    %v149 = vpack.c.b16 %v128, %v127
    %v150 = vpack.c.b16 %v130, %v129
    %v151 = vpack.c.b16 %v132, %v131
    %v152 = vpack.c.b16 %v134, %v133
    %v153 = vpack.c.b16 %v136, %v135
    %v154 = vpack.c.b16 %v138, %v137
    %171 = vmatprep.subr.bf16.mxu0 0
    %172 = vmatpush1.bf16.msra.mxu0 %v146
    %173 = vmatprep.subr.bf16.mxu0 0
    %174 = vmatpush1.bf16.msra.mxu0 %v145
    %175 = vmatprep.subr.bf16.mxu0 0
    %176 = vmatpush1.bf16.msra.mxu0 %v144
    %177 = vmatprep.subr.bf16.mxu0 0
    %178 = vmatpush1.bf16.msra.mxu0 %v143
    %179 = vmatprep.subr.bf16.mxu0 0
    %180 = vmatpush1.bf16.msra.mxu0 %v142
    %181 = vmatprep.subr.bf16.mxu0 0
    %182 = vmatpush1.bf16.msra.mxu0 %v141
    %183 = vmatprep.subr.bf16.mxu0 0
    %184 = vmatpush1.bf16.msra.mxu0 %v140
    %185 = vmatprep.subr.bf16.mxu0 0
    %186 = vmatpush1.bf16.msra.mxu0 %v139
    %187 = vmatprep.subr.bf16.mxu0 0
    %188 = vmatpush2.bf16.msra.mxu0 %v154
    %189 = vmatprep.subr.bf16.mxu0 0
    %190 = vmatpush2.bf16.msra.mxu0 %v153
    %191 = vmatprep.subr.bf16.mxu0 0
    %192 = vmatpush2.bf16.msra.mxu0 %v152
    %193 = vmatprep.subr.bf16.mxu0 0
    %194 = vmatpush2.bf16.msra.mxu0 %v151
    %195 = vmatprep.subr.bf16.mxu0 0
    %196 = vmatpush2.bf16.msra.mxu0 %v150
    %197 = vmatprep.subr.bf16.mxu0 0
    %198 = vmatpush2.bf16.msra.mxu0 %v149
    %199 = vmatprep.subr.bf16.mxu0 0
    %200 = vmatpush2.bf16.msra.mxu0 %v148
    %201 = vmatprep.subr.bf16.mxu0 0
    %202 = vmatpush2.bf16.msra.mxu0 %v147
    %203 = vmatprep.mubr.bf16.mxu0 %v72
    %204 = vmatmul.mubr.bf16.gmra.mxu0 %v71
    %v205 = vpop.f32.mrf.mxu0
    %v206 = vadd.f32 0.0, %v205
    %v207 = vpop.f32.mrf.mxu0
    %v208 = vpop.f32.mrf.mxu0
    %v209 = vpop.f32.mrf.mxu0
    %210 = vdwg.mxu0
    %v211 = vadd.f32 %v34, %v206
    %vm212 = vcmask 523264
    %213 = vst.msk [vmem:[#allocation2] sm:$0xff] %vm212, %v211
    // Predicated region
    $region34: #{tpu_custom_call.1} parent=1 // pred_check
      %p214 = pneg %p28
    $region35: #{tpu_custom_call.1} parent=1 // pred_check_branch
      %216 = sbr.rel (%p214) target = $region37
    $region36: #{tpu_custom_call.1} parent=1 // pred_region
      %v217 = vld [vmem:[#allocation2] sm:$0xff]
      %v218 = vld [vmem:[%s2] sm:$0x1]
      %v220 = vlaneseq
      %v221 = vshrl.u32 %v220, 7
      %v222 = vsub.s32 0, %v221
      %v223 = vrot.slane %v218, %v222
      %v225 = vadd.f32 %v217, %v223
      %v226 = vmax.f32 %v225, 0.0
      %vm227 = vcmp.ne.f32.partialorder %v225, %v225
      %v228 = vadd.f32 %v225, 0.0
      %v229 = vand.u32 2147483647, %v225
      %v230 = vsub.f32 0.0, %v229
      %v231 = vmul.f32 %v230, 1.442695
      %v232 = vpow.pop %v231
      %v233 = vadd.f32 %v232, 1.0
      %v234 = vlog2.pop %v233
      %v235 = vmul.f32 %v234, 0.6931472
      %v236 = vmul.f32 -0.5, %v232
      %v237 = vadd.f32 %v236, 1.0
      %v238 = vmul.f32 %v237, %v232
      %v239 = vand.u32 2147483647, %v232
      %vm240 = vcmp.lt.f32.partialorder %v239, 0.0004427343
      %v241 = vsel %vm240, %v238, %v235
      %v242 = vadd.f32 %v226, %v241
      %v243 = vsel %vm227, %v228, %v242
      %v244 = vpack.c.bf16 %v243, %v243
      %v245 = vld [vmem:[%s3] sm:$0xf]
      %v246 = vld [vmem:[%s3 + $0x4] sm:$0xf]
      %v247 = vld [vmem:[%s3 + $0x8] sm:$0xf]
      %v248 = vld [vmem:[%s3 + $0xc] sm:$0xf]
      %v249 = vld [vmem:[%s3 + $0x10] sm:$0xf]
      %v250 = vld [vmem:[%s3 + $0x14] sm:$0xf]
      %v251 = vld [vmem:[%s3 + $0x18] sm:$0xf]
      %v252 = vld [vmem:[%s3 + $0x1c] sm:$0xf]
      %v253 = vld [vmem:[%s4] sm:$0x1]
      %v255 = vlaneseq
      %v256 = vshrl.u32 %v255, 7
      %v257 = vsub.s32 0, %v256
      %v258 = vrot.slane %v253, %v257
      %v268 = vunpack.c.l.b16 %v245
      %v269 = vunpack.c.l.b16 %v246
      %v270 = vunpack.c.l.b16 %v247
      %v271 = vunpack.c.l.b16 %v248
      %v272 = vunpack.c.l.b16 %v249
      %v273 = vunpack.c.l.b16 %v250
      %v274 = vunpack.c.l.b16 %v251
      %v275 = vunpack.c.l.b16 %v252
      %v276 = vpack.c.b16 %v269, %v268
      %v277 = vpack.c.b16 %v271, %v270
      %v278 = vpack.c.b16 %v273, %v272
      %v279 = vpack.c.b16 %v275, %v274
      %v285 = vsel %vm212, %v244, 0
      %287 = vmatprep.subr.bf16.mxu0 0
      %288 = vmatpush1.bf16.msra.mxu0 0
      %289 = vmatprep.subr.bf16.mxu0 0
      %290 = vmatpush1.bf16.msra.mxu0 0
      %291 = vmatprep.subr.bf16.mxu0 0
      %292 = vmatpush1.bf16.msra.mxu0 0
      %293 = vmatprep.subr.bf16.mxu0 0
      %294 = vmatpush1.bf16.msra.mxu0 0
      %295 = vmatprep.subr.bf16.mxu0 0
      %296 = vmatpush1.bf16.msra.mxu0 %v279
      %297 = vmatprep.subr.bf16.mxu0 0
      %298 = vmatpush1.bf16.msra.mxu0 %v278
      %299 = vmatprep.subr.bf16.mxu0 0
      %300 = vmatpush1.bf16.msra.mxu0 %v277
      %301 = vmatprep.subr.bf16.mxu0 0
      %302 = vmatpush1.bf16.msra.mxu0 %v276
      %303 = vmatprep.subr.bf16.mxu0 0
      %304 = vmatpush2.bf16.msra.mxu0 0
      %305 = vmatprep.subr.bf16.mxu0 0
      %306 = vmatpush2.bf16.msra.mxu0 0
      %307 = vmatprep.subr.bf16.mxu0 0
      %308 = vmatpush2.bf16.msra.mxu0 0
      %309 = vmatprep.subr.bf16.mxu0 0
      %310 = vmatpush2.bf16.msra.mxu0 0
      %311 = vmatprep.subr.bf16.mxu0 0
      %312 = vmatpush2.bf16.msra.mxu0 0
      %313 = vmatprep.subr.bf16.mxu0 0
      %314 = vmatpush2.bf16.msra.mxu0 0
      %315 = vmatprep.subr.bf16.mxu0 0
      %316 = vmatpush2.bf16.msra.mxu0 0
      %317 = vmatprep.subr.bf16.mxu0 0
      %318 = vmatpush2.bf16.msra.mxu0 0
      %319 = vmatprep.mubr.bf16.mxu0 0
      %320 = vmatmul.mubr.bf16.gmra.mxu0 %v285
      %v321 = vpop.f32.mrf.mxu0
      %v322 = vadd.f32 %v258, %v321
      %v323 = vpop.f32.mrf.mxu0
      %v324 = vpop.f32.mrf.mxu0
      %v325 = vpop.f32.mrf.mxu0
      %326 = vdwg.mxu0
      %v327 = vmax.f32 %v322, 0.0
      %vm328 = vcmp.ne.f32.partialorder %v322, %v322
      %v329 = vadd.f32 %v322, 0.0
      %v330 = vand.u32 2147483647, %v322
      %v331 = vsub.f32 0.0, %v330
      %v332 = vmul.f32 %v331, 1.442695
      %v333 = vpow.pop %v332
      %v334 = vadd.f32 %v333, 1.0
      %v335 = vlog2.pop %v334
      %v336 = vmul.f32 %v335, 0.6931472
      %v337 = vmul.f32 -0.5, %v333
      %v338 = vadd.f32 %v337, 1.0
      %v339 = vmul.f32 %v338, %v333
      %v340 = vand.u32 2147483647, %v333
      %vm341 = vcmp.lt.f32.partialorder %v340, 0.0004427343
      %v342 = vsel %vm341, %v339, %v336
      %v343 = vadd.f32 %v327, %v342
      %v344 = vsel %vm328, %v329, %v343
      %v345 = vpack.c.bf16 %v344, %v344
      %v346 = vld [vmem:[%s5] sm:$0xf]
      %v347 = vld [vmem:[%s5 + $0x4] sm:$0xf]
      %v348 = vld [vmem:[%s5 + $0x8] sm:$0xf]
      %v349 = vld [vmem:[%s5 + $0xc] sm:$0xf]
      %v350 = vld [vmem:[%s5 + $0x10] sm:$0xf]
      %v351 = vld [vmem:[%s5 + $0x14] sm:$0xf]
      %v352 = vld [vmem:[%s5 + $0x18] sm:$0xf]
      %v353 = vld [vmem:[%s5 + $0x1c] sm:$0xf]
      %v354 = vld [vmem:[%s6] sm:$0x1]
      %v356 = vlaneseq
      %v357 = vshrl.u32 %v356, 7
      %v358 = vsub.s32 0, %v357
      %v359 = vrot.slane %v354, %v358
      %v369 = vunpack.c.l.b16 %v346
      %v370 = vunpack.c.l.b16 %v347
      %v371 = vunpack.c.l.b16 %v348
      %v372 = vunpack.c.l.b16 %v349
      %v373 = vunpack.c.l.b16 %v350
      %v374 = vunpack.c.l.b16 %v351
      %v375 = vunpack.c.l.b16 %v352
      %v376 = vunpack.c.l.b16 %v353
      %v377 = vpack.c.b16 %v370, %v369
      %v378 = vpack.c.b16 %v372, %v371
      %v379 = vpack.c.b16 %v374, %v373
      %v380 = vpack.c.b16 %v376, %v375
      %v386 = vsel %vm212, %v345, 0
      %388 = vmatprep.subr.bf16.mxu0 0
      %389 = vmatpush1.bf16.msra.mxu0 0
      %390 = vmatprep.subr.bf16.mxu0 0
      %391 = vmatpush1.bf16.msra.mxu0 0
      %392 = vmatprep.subr.bf16.mxu0 0
      %393 = vmatpush1.bf16.msra.mxu0 0
      %394 = vmatprep.subr.bf16.mxu0 0
      %395 = vmatpush1.bf16.msra.mxu0 0
      %396 = vmatprep.subr.bf16.mxu0 0
      %397 = vmatpush1.bf16.msra.mxu0 %v380
      %398 = vmatprep.subr.bf16.mxu0 0
      %399 = vmatpush1.bf16.msra.mxu0 %v379
      %400 = vmatprep.subr.bf16.mxu0 0
      %401 = vmatpush1.bf16.msra.mxu0 %v378
      %402 = vmatprep.subr.bf16.mxu0 0
      %403 = vmatpush1.bf16.msra.mxu0 %v377
      %404 = vmatprep.subr.bf16.mxu0 0
      %405 = vmatpush2.bf16.msra.mxu0 0
      %406 = vmatprep.subr.bf16.mxu0 0
      %407 = vmatpush2.bf16.msra.mxu0 0
      %408 = vmatprep.subr.bf16.mxu0 0
      %409 = vmatpush2.bf16.msra.mxu0 0
      %410 = vmatprep.subr.bf16.mxu0 0
      %411 = vmatpush2.bf16.msra.mxu0 0
      %412 = vmatprep.subr.bf16.mxu0 0
      %413 = vmatpush2.bf16.msra.mxu0 0
      %414 = vmatprep.subr.bf16.mxu0 0
      %415 = vmatpush2.bf16.msra.mxu0 0
      %416 = vmatprep.subr.bf16.mxu0 0
      %417 = vmatpush2.bf16.msra.mxu0 0
      %418 = vmatprep.subr.bf16.mxu0 0
      %419 = vmatpush2.bf16.msra.mxu0 0
      %420 = vmatprep.mubr.bf16.mxu0 0
      %421 = vmatmul.mubr.bf16.gmra.mxu0 %v386
      %v422 = vpop.f32.mrf.mxu0
      %v423 = vadd.f32 %v359, %v422
      %v424 = vpop.f32.mrf.mxu0
      %v425 = vpop.f32.mrf.mxu0
      %v426 = vpop.f32.mrf.mxu0
      %427 = vdwg.mxu0
      %v428 = vmul.f32 %v423, 1.442695
      %v429 = vpow.pop %v428
      %430 = vst [vmem:[#allocation3] sm:$0xff] %v429
    $region37: #{tpu_custom_call.1} parent=1 // pred_fallthru
      _
    // Predicated region
    $region38: #{tpu_custom_call.1} parent=1 // pred_check
      _
    $region39: #{tpu_custom_call.1} parent=1 // pred_check_branch
      %432 = sbr.rel (0) target = $region41
    $region40: #{tpu_custom_call.1} parent=1 // pred_region
      %s434 = ssub.s32 128, 128
      %435 = vsyncadd [#allocation4], %s434
      %s437 = sshll.u32 [#allocation3], 4
      %s438 = int_to_ptr.vmem [resolvable:$true] %s437
      %440 = dma.vmem_to_hbm [thread:$0]  %s438, 128, %s7, [#allocation4]
    $region41: #{tpu_custom_call.1} parent=1 // pred_fallthru
      _
    // Predicated region
    $region42: #{tpu_custom_call.1} parent=1 // pred_check
      _
    $region43: #{tpu_custom_call.1} parent=1 // pred_check_branch
      %442 = sbr.rel (0) target = $region45
    $region44: #{tpu_custom_call.1} parent=1 // pred_region
      %443 = dma.done [#allocation4], 128
    $region45: #{tpu_custom_call.1} parent=1 // pred_fallthru
      _
    %444 = vsyncpa [#allocation4], 1

</llo_original>
